<compile_context>
chip_gen: v7x
topology: tpu7x:2x2x1
jax: 0.10.0
libtpu: 0.0.40
codegen_flags: <defaults>
</compile_context>

<pallas_src>
import math
import jax
import jax.numpy as jnp
from jax import lax
from jax.experimental import pallas as pl
from jax.experimental.pallas import tpu as pltpu

# ---- module hyper-parameters (synthetic, deterministic) ----
IN_CHANNELS = 4
OUT_CHANNELS = 8
KERNEL_SIZE = 5          # odd -> padding = dilation*(K-1)//2 ("same" output)
STRIDE = 1               # TODO(synk): stride > 1 would need strided window gather.
DILATION = 1
PADDING = DILATION * (KERNEL_SIZE - 1) // 2
BATCH = 2
LENGTH = 16


def _make_kernel(N, C_in, K, L, L_out, dilation, padding):
    """Returns the Pallas kernel body with static shape params closed over."""

    def kernel(x_ref, w_ref, b_ref, o_ref, xpad_ref, slab_ref):
        """
        x_ref:    (N*C_in, L)         f32 input, batch folded onto sublanes
        w_ref:    (C_out, K*C_in)     bf16 weight, tap-major / channel-minor
        b_ref:    (C_out, 1)          f32 bias
        o_ref:    (C_out, N*L_out)    f32 lane-dense output slab
        xpad_ref: (N*C_in, L+2*pad)   bf16 reflect-padded input scratch
        slab_ref: (K*C_in, N*L_out)   bf16 im2col scratch
        """
        # ---- reflect pad (all batches at once, bf16 written directly) ----
        xpad_ref[:, padding:padding + L] = x_ref[...].astype(jnp.bfloat16)
        for j in range(padding):
            # left reflection: xpad[:, j] = x[:, padding - j]
            xpad_ref[:, j:j + 1] = \
                x_ref[:, padding - j:padding - j + 1].astype(jnp.bfloat16)
            # right reflection: xpad[:, padding + L + j] = x[:, L - 2 - j]
            xpad_ref[:, padding + L + j:padding + L + j + 1] = \
                x_ref[:, L - 2 - j:L - 1 - j].astype(jnp.bfloat16)

        # ---- im2col: ONE full-width lane slice per (batch, tap) ----
        # slab[k*C_in + ci, n*L_out + l] = xpad[n*C_in + ci, l + k*dilation]
        for n in range(N):
            for k in range(K):
                slab_ref[k * C_in:(k + 1) * C_in,
                         n * L_out:(n + 1) * L_out] = \
                    xpad_ref[n * C_in:(n + 1) * C_in,
                             k * dilation:k * dilation + L_out]

        # ---- single MXU matmul (bf16 x bf16 -> f32 acc), bias added in f32 ----
        y = jnp.dot(w_ref[...], slab_ref[...],
                    preferred_element_type=jnp.float32)    # (C_out, N*L_out)
        o_ref[...] = (y + b_ref[...]).astype(o_ref.dtype)  # one lane-dense store

    return kernel


def conv_norm_forward(x_ncl, weight, bias):
    """x_ncl: (N, C_in, L) f32; weight: (C_out, C_in, K) f32; bias: (C_out,) f32."""
    N, C_in, L = x_ncl.shape
    C_out, _, K = weight.shape
    assert STRIDE == 1 and K % 2 == 1 and PADDING < L
    L_out = (L + 2 * PADDING - DILATION * (K - 1) - 1) // STRIDE + 1
    assert L_out == L

    # Tiny parameter prep only:
    #  * weight pre-cast to bf16, tap-major / channel-minor to match slab rows.
    #  * activation gets only a zero-copy (contiguous-dim) reshape.
    w_bf = jnp.transpose(weight, (0, 2, 1)).reshape(C_out, K * C_in)
    w_bf = w_bf.astype(jnp.bfloat16)
    b2d = bias.reshape(C_out, 1)
    x2d = x_ncl.reshape(N * C_in, L)

    y = pl.pallas_call(
        _make_kernel(N, C_in, K, L, L_out, DILATION, PADDING),
        out_shape=jax.ShapeDtypeStruct((C_out, N * L_out), x_ncl.dtype),
        in_specs=[
            pl.BlockSpec(memory_space=pltpu.MemorySpace.VMEM),   # x2d
            pl.BlockSpec(memory_space=pltpu.MemorySpace.VMEM),   # w_bf
            pl.BlockSpec(memory_space=pltpu.MemorySpace.VMEM),   # b2d
        ],
        out_specs=pl.BlockSpec(memory_space=pltpu.MemorySpace.VMEM),
        scratch_shapes=[
            pltpu.VMEM((N * C_in, L + 2 * PADDING), jnp.bfloat16),   # xpad
            pltpu.VMEM((K * C_in, N * L_out), jnp.bfloat16),         # slab
        ],
    )(x2d, w_bf, b2d)

    # Lane-dense kernel output (C_out, N*L_out) -> PyTorch NCL (N, C_out, L_out).
    return jnp.transpose(y.reshape(C_out, N, L_out), (1, 0, 2))


def init_params(key):
    """Deterministic init matching the module: Xavier-uniform weight (gain=1 for
    'linear'), PyTorch-default Conv1d bias init U(-1/sqrt(fan_in), 1/sqrt(fan_in))."""
    kw, kb = jax.random.split(key)
    fan_in = IN_CHANNELS * KERNEL_SIZE
    fan_out = OUT_CHANNELS * KERNEL_SIZE
    gain = 1.0  # calculate_gain('linear')
    w_bound = gain * math.sqrt(6.0 / (fan_in + fan_out))
    weight = jax.random.uniform(
        kw, (OUT_CHANNELS, IN_CHANNELS, KERNEL_SIZE),
        minval=-w_bound, maxval=w_bound, dtype=jnp.float32)
    b_bound = 1.0 / math.sqrt(fan_in)
    bias = jax.random.uniform(
        kb, (OUT_CHANNELS,), minval=-b_bound, maxval=b_bound, dtype=jnp.float32)
    return weight, bias


def reference_forward(x_ncl, weight, bias):
    """Pure-JAX reference (reflect pad + VALID lax conv)."""
    x_pad = jnp.pad(x_ncl, ((0, 0), (0, 0), (PADDING, PADDING)), mode="reflect")
    y = lax.conv_general_dilated(
        x_pad, weight,
        window_strides=(STRIDE,), padding="VALID",
        rhs_dilation=(DILATION,),
        dimension_numbers=("NCH", "OIH", "NCH"),
        precision=lax.Precision.HIGHEST)
    return y + bias[None, :, None]


if __name__ == "__main__":
    key = jax.random.PRNGKey(0)
    k_x, k_p = jax.random.split(key)
    x = jax.random.normal(k_x, (BATCH, IN_CHANNELS, LENGTH), dtype=jnp.float32)
    weight, bias = init_params(k_p)

    out = jax.block_until_ready(conv_norm_forward(x, weight, bias))
    assert out.shape == (BATCH, OUT_CHANNELS, LENGTH), out.shape

    # Tight check against an f32 reference fed the same bf16-rounded operands the
    # MXU sees (isolates padding/indexing bugs from bf16 quantization noise).
    ref_q = jax.block_until_ready(reference_forward(
        x.astype(jnp.bfloat16).astype(jnp.float32),
        weight.astype(jnp.bfloat16).astype(jnp.float32), bias))
    assert jnp.allclose(out, ref_q, atol=1e-4, rtol=1e-4), \
        float(jnp.max(jnp.abs(out - ref_q)))

    # Loose check against the true f32 module semantics (bounds bf16 input error).
    ref = jax.block_until_ready(reference_forward(x, weight, bias))
    assert jnp.allclose(out, ref, atol=3e-2, rtol=3e-2), \
        float(jnp.max(jnp.abs(out - ref)))

    print("KERNEL_OK")
</pallas_src>

<mosaic_0001>
module attributes {stable_mosaic.version = 11 : i64} {
  func.func @kernel(%arg0: memref<8x16xf32, #tpu.memory_space<vmem>>, %arg1: memref<8x20xbf16, #tpu.memory_space<vmem>>, %arg2: memref<8x1xf32, #tpu.memory_space<vmem>>, %arg3: memref<8x32xf32, #tpu.memory_space<vmem>>, %arg4: memref<8x20xbf16, #tpu.memory_space<vmem>>, %arg5: memref<20x32xbf16, #tpu.memory_space<vmem>>) attributes {dimension_semantics = [], scalar_prefetch = 0 : i64, scratch_operands = 2 : i64, tpu.core_type = #tpu.core_type<tc>} {
    %c0 = arith.constant 0 : index
    %c0_0 = arith.constant 0 : index
    %0 = vector.load %arg0[%c0, %c0_0] : memref<8x16xf32, #tpu.memory_space<vmem>>, vector<8x16xf32>
    %1 = arith.truncf %0 : vector<8x16xf32> to vector<8x16xbf16>
    %c0_1 = arith.constant 0 : index
    %c2 = arith.constant 2 : index
    %2 = vector.load %arg4[%c0_1, %c2] : memref<8x20xbf16, #tpu.memory_space<vmem>>, vector<8x16xbf16>
    tpu.vector_store %arg4[%c0_1, %c2], %1 {strides = array<i32>} : memref<8x20xbf16, #tpu.memory_space<vmem>>, vector<8x16xbf16>,
    %c0_2 = arith.constant 0 : index
    %c2_3 = arith.constant 2 : index
    %3 = vector.load %arg0[%c0_2, %c2_3] : memref<8x16xf32, #tpu.memory_space<vmem>>, vector<8x1xf32>
    %4 = arith.truncf %3 : vector<8x1xf32> to vector<8x1xbf16>
    %c0_4 = arith.constant 0 : index
    %c0_5 = arith.constant 0 : index
    %5 = vector.load %arg4[%c0_4, %c0_5] : memref<8x20xbf16, #tpu.memory_space<vmem>>, vector<8x1xbf16>
    tpu.vector_store %arg4[%c0_4, %c0_5], %4 {strides = array<i32>} : memref<8x20xbf16, #tpu.memory_space<vmem>>, vector<8x1xbf16>,
    %c0_6 = arith.constant 0 : index
    %c14 = arith.constant 14 : index
    %6 = vector.load %arg0[%c0_6, %c14] : memref<8x16xf32, #tpu.memory_space<vmem>>, vector<8x1xf32>
    %7 = arith.truncf %6 : vector<8x1xf32> to vector<8x1xbf16>
    %c0_7 = arith.constant 0 : index
    %c18 = arith.constant 18 : index
    %8 = vector.load %arg4[%c0_7, %c18] : memref<8x20xbf16, #tpu.memory_space<vmem>>, vector<8x1xbf16>
    tpu.vector_store %arg4[%c0_7, %c18], %7 {strides = array<i32>} : memref<8x20xbf16, #tpu.memory_space<vmem>>, vector<8x1xbf16>,
    %c0_8 = arith.constant 0 : index
    %c1 = arith.constant 1 : index
    %9 = vector.load %arg0[%c0_8, %c1] : memref<8x16xf32, #tpu.memory_space<vmem>>, vector<8x1xf32>
    %10 = arith.truncf %9 : vector<8x1xf32> to vector<8x1xbf16>
    %c0_9 = arith.constant 0 : index
    %c1_10 = arith.constant 1 : index
    %11 = vector.load %arg4[%c0_9, %c1_10] : memref<8x20xbf16, #tpu.memory_space<vmem>>, vector<8x1xbf16>
    tpu.vector_store %arg4[%c0_9, %c1_10], %10 {strides = array<i32>} : memref<8x20xbf16, #tpu.memory_space<vmem>>, vector<8x1xbf16>,
    %c0_11 = arith.constant 0 : index
    %c13 = arith.constant 13 : index
    %12 = vector.load %arg0[%c0_11, %c13] : memref<8x16xf32, #tpu.memory_space<vmem>>, vector<8x1xf32>
    %13 = arith.truncf %12 : vector<8x1xf32> to vector<8x1xbf16>
    %c0_12 = arith.constant 0 : index
    %c19 = arith.constant 19 : index
    %14 = vector.load %arg4[%c0_12, %c19] : memref<8x20xbf16, #tpu.memory_space<vmem>>, vector<8x1xbf16>
    tpu.vector_store %arg4[%c0_12, %c19], %13 {strides = array<i32>} : memref<8x20xbf16, #tpu.memory_space<vmem>>, vector<8x1xbf16>,
    %c0_13 = arith.constant 0 : index
    %c0_14 = arith.constant 0 : index
    %15 = vector.load %arg4[%c0_13, %c0_14] : memref<8x20xbf16, #tpu.memory_space<vmem>>, vector<4x16xbf16>
    %c0_15 = arith.constant 0 : index
    %c0_16 = arith.constant 0 : index
    %16 = vector.load %arg5[%c0_15, %c0_16] : memref<20x32xbf16, #tpu.memory_space<vmem>>, vector<4x16xbf16>
    tpu.vector_store %arg5[%c0_15, %c0_16], %15 {strides = array<i32>} : memref<20x32xbf16, #tpu.memory_space<vmem>>, vector<4x16xbf16>,
    %c0_17 = arith.constant 0 : index
    %c1_18 = arith.constant 1 : index
    %17 = vector.load %arg4[%c0_17, %c1_18] : memref<8x20xbf16, #tpu.memory_space<vmem>>, vector<4x16xbf16>
    %c4 = arith.constant 4 : index
    %c0_19 = arith.constant 0 : index
    %18 = vector.load %arg5[%c4, %c0_19] : memref<20x32xbf16, #tpu.memory_space<vmem>>, vector<4x16xbf16>
    tpu.vector_store %arg5[%c4, %c0_19], %17 {strides = array<i32>} : memref<20x32xbf16, #tpu.memory_space<vmem>>, vector<4x16xbf16>,
    %c0_20 = arith.constant 0 : index
    %c2_21 = arith.constant 2 : index
    %19 = vector.load %arg4[%c0_20, %c2_21] : memref<8x20xbf16, #tpu.memory_space<vmem>>, vector<4x16xbf16>
    %c8 = arith.constant 8 : index
    %c0_22 = arith.constant 0 : index
    %20 = vector.load %arg5[%c8, %c0_22] : memref<20x32xbf16, #tpu.memory_space<vmem>>, vector<4x16xbf16>
    tpu.vector_store %arg5[%c8, %c0_22], %19 {strides = array<i32>} : memref<20x32xbf16, #tpu.memory_space<vmem>>, vector<4x16xbf16>,
    %c0_23 = arith.constant 0 : index
    %c3 = arith.constant 3 : index
    %21 = vector.load %arg4[%c0_23, %c3] : memref<8x20xbf16, #tpu.memory_space<vmem>>, vector<4x16xbf16>
    %c12 = arith.constant 12 : index
    %c0_24 = arith.constant 0 : index
    %22 = vector.load %arg5[%c12, %c0_24] : memref<20x32xbf16, #tpu.memory_space<vmem>>, vector<4x16xbf16>
    tpu.vector_store %arg5[%c12, %c0_24], %21 {strides = array<i32>} : memref<20x32xbf16, #tpu.memory_space<vmem>>, vector<4x16xbf16>,
    %c0_25 = arith.constant 0 : index
    %c4_26 = arith.constant 4 : index
    %23 = vector.load %arg4[%c0_25, %c4_26] : memref<8x20xbf16, #tpu.memory_space<vmem>>, vector<4x16xbf16>
    %c16 = arith.constant 16 : index
    %c0_27 = arith.constant 0 : index
    %24 = vector.load %arg5[%c16, %c0_27] : memref<20x32xbf16, #tpu.memory_space<vmem>>, vector<4x16xbf16>
    tpu.vector_store %arg5[%c16, %c0_27], %23 {strides = array<i32>} : memref<20x32xbf16, #tpu.memory_space<vmem>>, vector<4x16xbf16>,
    %c4_28 = arith.constant 4 : index
    %c0_29 = arith.constant 0 : index
    %25 = vector.load %arg4[%c4_28, %c0_29] : memref<8x20xbf16, #tpu.memory_space<vmem>>, vector<4x16xbf16>
    %c0_30 = arith.constant 0 : index
    %c16_31 = arith.constant 16 : index
    %26 = vector.load %arg5[%c0_30, %c16_31] : memref<20x32xbf16, #tpu.memory_space<vmem>>, vector<4x16xbf16>
    tpu.vector_store %arg5[%c0_30, %c16_31], %25 {strides = array<i32>} : memref<20x32xbf16, #tpu.memory_space<vmem>>, vector<4x16xbf16>,
    %c4_32 = arith.constant 4 : index
    %c1_33 = arith.constant 1 : index
    %27 = vector.load %arg4[%c4_32, %c1_33] : memref<8x20xbf16, #tpu.memory_space<vmem>>, vector<4x16xbf16>
    %c4_34 = arith.constant 4 : index
    %c16_35 = arith.constant 16 : index
    %28 = vector.load %arg5[%c4_34, %c16_35] : memref<20x32xbf16, #tpu.memory_space<vmem>>, vector<4x16xbf16>
    tpu.vector_store %arg5[%c4_34, %c16_35], %27 {strides = array<i32>} : memref<20x32xbf16, #tpu.memory_space<vmem>>, vector<4x16xbf16>,
    %c4_36 = arith.constant 4 : index
    %c2_37 = arith.constant 2 : index
    %29 = vector.load %arg4[%c4_36, %c2_37] : memref<8x20xbf16, #tpu.memory_space<vmem>>, vector<4x16xbf16>
    %c8_38 = arith.constant 8 : index
    %c16_39 = arith.constant 16 : index
    %30 = vector.load %arg5[%c8_38, %c16_39] : memref<20x32xbf16, #tpu.memory_space<vmem>>, vector<4x16xbf16>
    tpu.vector_store %arg5[%c8_38, %c16_39], %29 {strides = array<i32>} : memref<20x32xbf16, #tpu.memory_space<vmem>>, vector<4x16xbf16>,
    %c4_40 = arith.constant 4 : index
    %c3_41 = arith.constant 3 : index
    %31 = vector.load %arg4[%c4_40, %c3_41] : memref<8x20xbf16, #tpu.memory_space<vmem>>, vector<4x16xbf16>
    %c12_42 = arith.constant 12 : index
    %c16_43 = arith.constant 16 : index
    %32 = vector.load %arg5[%c12_42, %c16_43] : memref<20x32xbf16, #tpu.memory_space<vmem>>, vector<4x16xbf16>
    tpu.vector_store %arg5[%c12_42, %c16_43], %31 {strides = array<i32>} : memref<20x32xbf16, #tpu.memory_space<vmem>>, vector<4x16xbf16>,
    %c4_44 = arith.constant 4 : index
    %c4_45 = arith.constant 4 : index
    %33 = vector.load %arg4[%c4_44, %c4_45] : memref<8x20xbf16, #tpu.memory_space<vmem>>, vector<4x16xbf16>
    %c16_46 = arith.constant 16 : index
    %c16_47 = arith.constant 16 : index
    %34 = vector.load %arg5[%c16_46, %c16_47] : memref<20x32xbf16, #tpu.memory_space<vmem>>, vector<4x16xbf16>
    tpu.vector_store %arg5[%c16_46, %c16_47], %33 {strides = array<i32>} : memref<20x32xbf16, #tpu.memory_space<vmem>>, vector<4x16xbf16>,
    %c0_48 = arith.constant 0 : index
    %c0_49 = arith.constant 0 : index
    %35 = vector.load %arg1[%c0_48, %c0_49] : memref<8x20xbf16, #tpu.memory_space<vmem>>, vector<8x20xbf16>
    %c0_50 = arith.constant 0 : index
    %c0_51 = arith.constant 0 : index
    %36 = vector.load %arg5[%c0_50, %c0_51] : memref<20x32xbf16, #tpu.memory_space<vmem>>, vector<20x32xbf16>
    %cst = arith.constant dense<0.000000e+00> : vector<8x32xf32>
    %37 = tpu.matmul %35, %36, %cst {dimension_numbers = #tpu.dot_dimension_numbers<[1], [0], [0], [1], [0, 0, 1, 1], [], []>} : vector<8x20xbf16>, vector<20x32xbf16>, vector<8x32xf32> -> vector<8x32xf32>
    %c0_52 = arith.constant 0 : index
    %c0_53 = arith.constant 0 : index
    %38 = vector.load %arg2[%c0_52, %c0_53] : memref<8x1xf32, #tpu.memory_space<vmem>>, vector<8x1xf32>
    %39 = vector.broadcast %38 : vector<8x1xf32> to vector<8x32xf32>
    %40 = arith.addf %37, %39 : vector<8x32xf32>
    %c0_54 = arith.constant 0 : index
    %c0_55 = arith.constant 0 : index
    %41 = vector.load %arg3[%c0_54, %c0_55] : memref<8x32xf32, #tpu.memory_space<vmem>>, vector<8x32xf32>
    tpu.vector_store %arg3[%c0_54, %c0_55], %40 {strides = array<i32>} : memref<8x32xf32, #tpu.memory_space<vmem>>, vector<8x32xf32>,
    return
  }
}

</mosaic_0001>

<llo_original>
// kernel: tpu_custom_call.1
$region0: #{tpu_custom_call.1}
  #allocation0 [shape = 'u32[]', space=smem, size = 0x4, offset = 0x4, fixed_abs, tag = 'smem constant byte address 0x4 - core index']
  #allocation1 [shape = 'u32[144,128]{1,0:T(1,128)}', space=vmem, size = 0x12000, scoped, tag = 'internal scratch']
  #allocation2 [shape = 'bf16[8,20]{1,0:T(8,128)(2,1)}', space=vmem, size = 0x800, scoped, tag = 'scratch operand']
  #allocation3 [shape = 'bf16[20,32]{1,0:T(8,128)(2,1)}', space=vmem, size = 0x1800, scoped, tag = 'scratch operand']
  %s0 = inlined_call_operand.vmem [shape: f32[8,16], index: 0, kind: input, shape index: {}]
  %s1 = inlined_call_operand.vmem [shape: bf16[8,20], index: 1, kind: input, shape index: {}]
  %s2 = inlined_call_operand.vmem [shape: f32[8,1], index: 2, kind: input, shape index: {}]
  %s3 = inlined_call_operand.hbm [shape: f32[8,32], index: 3, kind: output, shape index: {}]
  %s4 = sld [smem:[#allocation0]]
  $region22: #{tpu_custom_call.1} parent=0
    _
  %s6 = ssub.s32 1, %s4
  %s7 = scalar_select 0, %s6, %s4
  $region1: #{tpu_custom_call.1} parent=0
    #allocation4 [shape = 'u8[4096]{0}', space=vmem, size = 0x1000, scoped, tag = 'output window, operand 0, single buffered']
    #allocation5 [shape = 's32[1]{0}', space=sflag, size = 0x4, scoped, tag = 'scoped memory for tpu_custom_call.1']
    %8 = vsyncpa [#allocation5], 0
    // Predicated region
    $region2: #{tpu_custom_call.1} parent=1 // pred_check
      _
    $region3: #{tpu_custom_call.1} parent=1 // pred_check_branch
      %10 = sbr.rel (0) target = $region5
    $region4: #{tpu_custom_call.1} parent=1 // pred_region
      _
    $region5: #{tpu_custom_call.1} parent=1 // pred_fallthru
      _
    // Predicated region
    $region6: #{tpu_custom_call.1} parent=1 // pred_check
      _
    $region7: #{tpu_custom_call.1} parent=1 // pred_check_branch
      %12 = sbr.rel (0) target = $region9
    $region8: #{tpu_custom_call.1} parent=1 // pred_region
      _
    $region9: #{tpu_custom_call.1} parent=1 // pred_fallthru
      _
    // Predicated region
    $region10: #{tpu_custom_call.1} parent=1 // pred_check
      _
    $region11: #{tpu_custom_call.1} parent=1 // pred_check_branch
      %14 = sbr.rel (0) target = $region13
    $region12: #{tpu_custom_call.1} parent=1 // pred_region
      _
    $region13: #{tpu_custom_call.1} parent=1 // pred_fallthru
      _
    %v16 = vld [vmem:[%s0] sm:$0xff]
    %v17 = vpack.c.bf16 %v16, %v16
    %v19 = vunpack.c.l.b16 %v17
    %v20 = vpack.c.b16 %v19, %v19
    %21 = vrot.lane.b32.xlu0 %v20, 2
    %v22 = vpop.permute.xlu0 %21
    %vm24 = vcmask 142352
    %25 = vst.msk [vmem:[#allocation2] sm:$0xf] %vm24, %v22
    %v26 = vld [vmem:[%s0] sm:$0xff]
    %v27 = vpack.c.bf16 %v26, %v26
    %v29 = vunpack.c.l.b16 %v27
    %v30 = vpack.c.b16 %v29, %v29
    %31 = vrot.lane.b32.xlu0 %v30, 126
    %v32 = vpop.permute.xlu0 %31
    %vm34 = vcmask 3072
    %35 = vst.msk [vmem:[#allocation2] sm:$0xf] %vm34, %v32
    %v36 = vld [vmem:[%s0] sm:$0xff]
    %v37 = vpack.c.bf16 %v36, %v36
    %v39 = vunpack.c.l.b16 %v37
    %v40 = vpack.c.b16 %v39, %v39
    %41 = vrot.lane.b32.xlu0 %v40, 4
    %v42 = vpop.permute.xlu0 %41
    %vm44 = vcmask 150672
    %45 = vst.msk [vmem:[#allocation2] sm:$0xf] %vm44, %v42
    %v46 = vld [vmem:[%s0] sm:$0xff]
    %v47 = vpack.c.bf16 %v46, %v46
    %vm48 = vcmask 11272
    %49 = vst.msk [vmem:[#allocation2] sm:$0xf] %vm48, %v47
    %v50 = vld [vmem:[%s0] sm:$0xff]
    %v51 = vpack.c.bf16 %v50, %v50
    %v53 = vunpack.c.l.b16 %v51
    %v54 = vpack.c.b16 %v53, %v53
    %55 = vrot.lane.b32.xlu0 %v54, 6
    %v56 = vpop.permute.xlu0 %55
    %vm58 = vcmask 158872
    %59 = vst.msk [vmem:[#allocation2] sm:$0xf] %vm58, %v56
    %v60 = vld [vmem:[#allocation2] sm:$0x3]
    %vm61 = vcmask 123904
    %62 = vst.msk [vmem:[#allocation3] sm:$0x3] %vm61, %v60
    %v63 = vld [vmem:[#allocation2] sm:$0x3]
    %v65 = vrot.slane %v63, 6
    %66 = vrot.lane.b32.xlu0 %v65, 127
    %v67 = vpop.permute.xlu0 %66
    %vm69 = vcmask 125954
    %70 = vst.msk [vmem:[#allocation3] sm:$0xc] %vm69, %v67
    %v71 = vld [vmem:[#allocation2] sm:$0x3]
    %73 = vrot.lane.b32.xlu0 %v71, 126
    %v74 = vpop.permute.xlu0 %73
    %76 = vst.msk [vmem:[#allocation3 + $0x4] sm:$0x3] %vm61, %v74
    %v77 = vld [vmem:[#allocation2] sm:$0x3]
    %v79 = vrot.slane %v77, 6
    %80 = vrot.lane.b32.xlu0 %v79, 125
    %v81 = vpop.permute.xlu0 %80
    %83 = vst.msk [vmem:[#allocation3 + $0x4] sm:$0xc] %vm69, %v81
    %v84 = vld [vmem:[#allocation2] sm:$0x3]
    %86 = vrot.lane.b32.xlu0 %v84, 124
    %v87 = vpop.permute.xlu0 %86
    %89 = vst.msk [vmem:[#allocation3 + $0x8] sm:$0x3] %vm61, %v87
    %v90 = vld [vmem:[#allocation2] sm:$0xc]
    %v92 = vrot.slane %v90, 6
    %v93 = vrot.slane %v92, 4
    %94 = vrot.lane.b32.xlu0 %v93, 16
    %v95 = vpop.permute.xlu0 %94
    %vm97 = vcmask 255104
    %98 = vst.msk [vmem:[#allocation3] sm:$0x3] %vm97, %v95
    %v99 = vld [vmem:[#allocation2] sm:$0xc]
    %101 = vrot.lane.b32.xlu0 %v99, 15
    %v102 = vpop.permute.xlu0 %101
    %vm104 = vcmask 257154
    %105 = vst.msk [vmem:[#allocation3] sm:$0xc] %vm104, %v102
    %v106 = vld [vmem:[#allocation2] sm:$0xc]
    %v108 = vrot.slane %v106, 6
    %v109 = vrot.slane %v108, 4
    %110 = vrot.lane.b32.xlu0 %v109, 14
    %v111 = vpop.permute.xlu0 %110
    %113 = vst.msk [vmem:[#allocation3 + $0x4] sm:$0x3] %vm97, %v111
    %v114 = vld [vmem:[#allocation2] sm:$0xc]
    %116 = vrot.lane.b32.xlu0 %v114, 13
    %v117 = vpop.permute.xlu0 %116
    %119 = vst.msk [vmem:[#allocation3 + $0x4] sm:$0xc] %vm104, %v117
    %v120 = vld [vmem:[#allocation2] sm:$0xc]
    %v122 = vrot.slane %v120, 6
    %v123 = vrot.slane %v122, 4
    %124 = vrot.lane.b32.xlu0 %v123, 12
    %v125 = vpop.permute.xlu0 %124
    %127 = vst.msk [vmem:[#allocation3 + $0x8] sm:$0x3] %vm97, %v125
    %v128 = vld [vmem:[%s1] sm:$0xf]
    %v129 = vld [vmem:[#allocation3] sm:$0xf]
    %v130 = vld [vmem:[#allocation3 + $0x4] sm:$0xf]
    %v131 = vld [vmem:[#allocation3 + $0x8] sm:$0x3]
    %v132 = vld [vmem:[%s2] sm:$0xff]
    %134 = vset.pattern.permute.xlu0 0
    %135 = vperm.xlu0 %134, %v132
    %v136 = vpop.permute.xlu0 %135
    %v141 = vunpack.c.l.b16 %v129
    %v142 = vunpack.c.l.b16 %v130
    %v143 = vunpack.c.l.b16 %v131
    %v144 = vpack.c.b16 %v142, %v141
    %v145 = vpack.c.b16 %v143, %v143
    %vm147 = vcmask 162816
    %v149 = vsel %vm147, %v128, 0
    %vm151 = vcmask 1041408
    %v153 = vsel %vm151, %v145, 0
    %155 = vmatprep.subr.bf16.mxu0 0
    %156 = vmatpush1.bf16.msra.mxu0 %v144
    %157 = vmatprep.subr.bf16.mxu0 0
    %158 = vmatpush1.bf16.msra.mxu0 %v153
    %159 = vmatprep.subr.bf16.mxu0 0
    %160 = vmatpush1.bf16.msra.mxu0 0
    %161 = vmatprep.subr.bf16.mxu0 0
    %162 = vmatpush1.bf16.msra.mxu0 0
    %163 = vmatprep.subr.bf16.mxu0 0
    %164 = vmatpush1.bf16.msra.mxu0 0
    %165 = vmatprep.subr.bf16.mxu0 0
    %166 = vmatpush1.bf16.msra.mxu0 0
    %167 = vmatprep.subr.bf16.mxu0 0
    %168 = vmatpush1.bf16.msra.mxu0 0
    %169 = vmatprep.subr.bf16.mxu0 0
    %170 = vmatpush1.bf16.msra.mxu0 0
    %171 = vmatprep.subr.bf16.mxu0 0
    %172 = vmatpush1.bf16.msra.mxu0 0
    %173 = vmatprep.subr.bf16.mxu0 0
    %174 = vmatpush1.bf16.msra.mxu0 0
    %175 = vmatprep.subr.bf16.mxu0 0
    %176 = vmatpush1.bf16.msra.mxu0 0
    %177 = vmatprep.subr.bf16.mxu0 0
    %178 = vmatpush1.bf16.msra.mxu0 0
    %179 = vmatprep.subr.bf16.mxu0 0
    %180 = vmatpush1.bf16.msra.mxu0 0
    %181 = vmatprep.subr.bf16.mxu0 0
    %182 = vmatpush1.bf16.msra.mxu0 0
    %183 = vmatprep.subr.bf16.mxu0 0
    %184 = vmatpush1.bf16.msra.mxu0 0
    %185 = vmatprep.subr.bf16.mxu0 0
    %186 = vmatpush1.bf16.msra.mxu0 0
    %187 = vmatprep.mubr.bf16.mxu0 0
    %188 = vmatmul.mubr.bf16.gmra.mrb[0].mxu0 %v149
    %v189 = vpop.f32.mrb[0].mxu0
    %v190 = vadd.f32 %v136, %v189
    %v191 = vpop.f32.mrb[0].mxu0
    %v192 = vpop.f32.mrb[0].mxu0
    %v193 = vpop.f32.mrb[0].mxu0
    %194 = vdwg.mxu0
    %vm195 = vcmask 261120
    %196 = vst.msk [vmem:[#allocation4] sm:$0xff] %vm195, %v190
    // Predicated region
    $region14: #{tpu_custom_call.1} parent=1 // pred_check
      _
    $region15: #{tpu_custom_call.1} parent=1 // pred_check_branch
      %198 = sbr.rel (0) target = $region17
    $region16: #{tpu_custom_call.1} parent=1 // pred_region
      %s200 = ssub.s32 128, 128
      %201 = vsyncadd [#allocation5], %s200
      %s203 = sshll.u32 [#allocation4], 4
      %s204 = int_to_ptr.vmem [resolvable:$true] %s203
      %206 = dma.vmem_to_hbm [thread:$0]  %s204, 128, %s3, [#allocation5]
    $region17: #{tpu_custom_call.1} parent=1 // pred_fallthru
      _
    // Predicated region
    $region18: #{tpu_custom_call.1} parent=1 // pred_check
      _
    $region19: #{tpu_custom_call.1} parent=1 // pred_check_branch
      %208 = sbr.rel (0) target = $region21
    $region20: #{tpu_custom_call.1} parent=1 // pred_region
      %209 = dma.done [#allocation5], 128
    $region21: #{tpu_custom_call.1} parent=1 // pred_fallthru
      _
    %210 = vsyncpa [#allocation5], 1

</llo_original>
